<compile_context>
chip_gen: v7x
topology: tpu7x:2x2x1
jax: 0.10.0
libtpu: 0.0.40
codegen_flags: <defaults>
</compile_context>

<pallas_src>
import jax
import jax.numpy as jnp
from jax.experimental import pallas as pl
from jax.experimental.pallas import tpu as pltpu

_OUT_SHAPE = (8, 128)  # one full f32 vreg -> single unmasked store


def _uwl_kernel(lvc_ref, lvs_ref, cls_ref, seg_ref, out_ref):
    # SMEM scalar reads.
    lvc = lvc_ref[0, 0]
    lvs = lvs_ref[0, 0]
    cl = cls_ref[0, 0]
    sl = seg_ref[0, 0]

    # Even lanes carry the cls task, odd lanes the seg task (lane 0 / lane 1
    # are the ones we actually read back).
    lane = jax.lax.broadcasted_iota(jnp.int32, _OUT_SHAPE, 1)
    is_cls = (lane & 1) == 0
    lv = jnp.where(is_cls, lvc, lvs)
    loss = jnp.where(is_cls, cl, sl)

    # weighted = exp(-log_var) * loss + log_var   (EUP exp + VPU mul/add)
    w = jnp.exp(-lv) * loss + lv

    # total = weighted_cls + weighted_seg, computed in-kernel via a masked
    # cross-lane reduction (XLU), placed in lane 2.
    total = jnp.sum(jnp.where(lane < 2, w, 0.0), axis=-1, keepdims=True)  # (8, 1)
    total_b = jnp.broadcast_to(total, _OUT_SHAPE)

    out_ref[...] = jnp.where(lane == 2, total_b, w)


@jax.jit
def _forward_impl(cls_loss, seg_loss, log_var_cls, log_var_seg):
    f32 = jnp.float32

    def as_smem_scalar(x):
        return jnp.reshape(jnp.asarray(x, f32), (1, 1))

    smem = pl.BlockSpec(memory_space=pltpu.MemorySpace.SMEM)
    out = pl.pallas_call(
        _uwl_kernel,
        out_shape=jax.ShapeDtypeStruct(_OUT_SHAPE, f32),
        in_specs=[smem, smem, smem, smem],
        out_specs=pl.BlockSpec(memory_space=pltpu.MemorySpace.VMEM),
    )(
        as_smem_scalar(log_var_cls),
        as_smem_scalar(log_var_seg),
        as_smem_scalar(cls_loss),
        as_smem_scalar(seg_loss),
    )
    # lane 2 = total, lane 0 = weighted_cls, lane 1 = weighted_seg
    return out[0, 2], out[0, 0], out[0, 1]


@jax.custom_vjp
def uncertainty_weighted_loss(cls_loss, seg_loss, log_var_cls, log_var_seg):
    """Mirrors UncertaintyWeightedLoss.forward.

    Returns (total, weighted_cls, weighted_seg) as device arrays (no blocking
    .item() host syncs; pull once at logging time with jax.device_get).
    """
    return _forward_impl(cls_loss, seg_loss, log_var_cls, log_var_seg)


def _uwl_fwd(cls_loss, seg_loss, log_var_cls, log_var_seg):
    out = _forward_impl(cls_loss, seg_loss, log_var_cls, log_var_seg)
    res = (jnp.asarray(cls_loss, jnp.float32), jnp.asarray(seg_loss, jnp.float32),
           jnp.asarray(log_var_cls, jnp.float32), jnp.asarray(log_var_seg, jnp.float32))
    return out, res


def _uwl_bwd(res, g):
    cls_loss, seg_loss, lvc, lvs = res
    g_total, g_wc, g_ws = g
    gc = g_total + g_wc
    gs = g_total + g_ws
    ec = jnp.exp(-lvc)
    es = jnp.exp(-lvs)
    d_cls = gc * ec
    d_seg = gs * es
    d_lvc = gc * (1.0 - ec * cls_loss)
    d_lvs = gs * (1.0 - es * seg_loss)
    return d_cls, d_seg, d_lvc, d_lvs


uncertainty_weighted_loss.defvjp(_uwl_fwd, _uwl_bwd)


if __name__ == "__main__":
    key = jax.random.PRNGKey(0)
    k1, k2 = jax.random.split(key)

    # Deterministic "loss" scalars (losses are positive scalars in practice).
    cls_loss = jnp.abs(jax.random.normal(k1, (), dtype=jnp.float32))
    seg_loss = jnp.abs(jax.random.normal(k2, (), dtype=jnp.float32))

    # Parameters initialized exactly as in __init__: log_var_* = 0.0
    log_var_cls = jnp.float32(0.0)
    log_var_seg = jnp.float32(0.0)

    total, w_cls, w_seg = uncertainty_weighted_loss(
        cls_loss, seg_loss, log_var_cls, log_var_seg)
    total = jax.block_until_ready(total)

    # Reference check in plain JAX (single host pull at the end).
    ref_w_cls = jnp.exp(-log_var_cls) * cls_loss + log_var_cls
    ref_w_seg = jnp.exp(-log_var_seg) * seg_loss + log_var_seg
    ref_total = ref_w_cls + ref_w_seg

    total_h, w_cls_h, w_seg_h = jax.device_get((total, w_cls, w_seg))
    assert abs(float(total_h) - float(ref_total)) < 1e-6
    assert abs(float(w_cls_h) - float(ref_w_cls)) < 1e-6
    assert abs(float(w_seg_h) - float(ref_w_seg)) < 1e-6

    # Gradient check for the learnable log-variances (custom_vjp path).
    def total_fn(lvc, lvs):
        t, _, _ = uncertainty_weighted_loss(cls_loss, seg_loss, lvc, lvs)
        return t

    g_lvc, g_lvs = jax.grad(total_fn, argnums=(0, 1))(log_var_cls, log_var_seg)
    ref_g_lvc = 1.0 - jnp.exp(-log_var_cls) * cls_loss
    ref_g_lvs = 1.0 - jnp.exp(-log_var_seg) * seg_loss
    g_lvc_h, g_lvs_h, rg_lvc_h, rg_lvs_h = jax.device_get(
        (g_lvc, g_lvs, ref_g_lvc, ref_g_lvs))
    assert abs(float(g_lvc_h) - float(rg_lvc_h)) < 1e-6
    assert abs(float(g_lvs_h) - float(rg_lvs_h)) < 1e-6

    print("KERNEL_OK")
</pallas_src>

<mosaic_0001>
module attributes {stable_mosaic.version = 11 : i64} {
  func.func @_uwl_kernel(%arg0: memref<1x1xf32, #tpu.memory_space<smem>>, %arg1: memref<1x1xf32, #tpu.memory_space<smem>>, %arg2: memref<1x1xf32, #tpu.memory_space<smem>>, %arg3: memref<1x1xf32, #tpu.memory_space<smem>>, %arg4: memref<8x128xf32, #tpu.memory_space<vmem>>) attributes {dimension_semantics = [], scalar_prefetch = 0 : i64, scratch_operands = 0 : i64, tpu.core_type = #tpu.core_type<tc>} {
    %c0 = arith.constant 0 : index
    %c0_0 = arith.constant 0 : index
    %0 = memref.load %arg0[%c0, %c0_0] : memref<1x1xf32, #tpu.memory_space<smem>>
    %c0_1 = arith.constant 0 : index
    %c0_2 = arith.constant 0 : index
    %1 = memref.load %arg1[%c0_1, %c0_2] : memref<1x1xf32, #tpu.memory_space<smem>>
    %c0_3 = arith.constant 0 : index
    %c0_4 = arith.constant 0 : index
    %2 = memref.load %arg2[%c0_3, %c0_4] : memref<1x1xf32, #tpu.memory_space<smem>>
    %c0_5 = arith.constant 0 : index
    %c0_6 = arith.constant 0 : index
    %3 = memref.load %arg3[%c0_5, %c0_6] : memref<1x1xf32, #tpu.memory_space<smem>>
    %4 = tpu.iota {dimensions = array<i32: 1>} : vector<8x128xi32>
    %c1_i32 = arith.constant 1 : i32
    %5 = vector.broadcast %c1_i32 : i32 to vector<8x128xi32>
    %6 = arith.andi %4, %5 : vector<8x128xi32>
    %c0_i32 = arith.constant 0 : i32
    %7 = vector.broadcast %c0_i32 : i32 to vector<8x128xi32>
    %8 = arith.cmpi eq, %6, %7 : vector<8x128xi32>
    %9 = vector.broadcast %0 : f32 to vector<8x128xf32>
    %10 = vector.broadcast %1 : f32 to vector<8x128xf32>
    %11 = arith.select %8, %9, %10 : vector<8x128xi1>, vector<8x128xf32>
    %12 = vector.broadcast %2 : f32 to vector<8x128xf32>
    %13 = vector.broadcast %3 : f32 to vector<8x128xf32>
    %14 = arith.select %8, %12, %13 : vector<8x128xi1>, vector<8x128xf32>
    %cst = arith.constant 0.000000e+00 : f32
    %15 = vector.broadcast %cst : f32 to vector<8x128xf32>
    %16 = arith.subf %15, %11 : vector<8x128xf32>
    %17 = math.exp %16 : vector<8x128xf32>
    %18 = arith.mulf %17, %14 : vector<8x128xf32>
    %19 = arith.addf %18, %11 : vector<8x128xf32>
    %c2_i32 = arith.constant 2 : i32
    %20 = vector.broadcast %c2_i32 : i32 to vector<8x128xi32>
    %21 = arith.cmpi slt, %4, %20 : vector<8x128xi32>
    %cst_7 = arith.constant 0.000000e+00 : f32
    %22 = vector.broadcast %cst_7 : f32 to vector<8x128xf32>
    %23 = arith.select %21, %19, %22 : vector<8x128xi1>, vector<8x128xf32>
    %cst_8 = arith.constant dense<0.000000e+00> : vector<8xf32>
    %24 = vector.multi_reduction <add>, %23, %cst_8 [1] : vector<8x128xf32> to vector<8xf32>
    %25 = vector.shape_cast %24 : vector<8xf32> to vector<8x1xf32>
    %26 = vector.shape_cast %25 : vector<8x1xf32> to vector<8x1xf32>
    %27 = vector.broadcast %26 : vector<8x1xf32> to vector<8x128xf32>
    %c2_i32_9 = arith.constant 2 : i32
    %28 = vector.broadcast %c2_i32_9 : i32 to vector<8x128xi32>
    %29 = arith.cmpi eq, %4, %28 : vector<8x128xi32>
    %30 = arith.select %29, %27, %19 : vector<8x128xi1>, vector<8x128xf32>
    %c0_10 = arith.constant 0 : index
    %c0_11 = arith.constant 0 : index
    %31 = vector.load %arg4[%c0_10, %c0_11] : memref<8x128xf32, #tpu.memory_space<vmem>>, vector<8x128xf32>
    tpu.vector_store %arg4[%c0_10, %c0_11], %30 {strides = array<i32>} : memref<8x128xf32, #tpu.memory_space<vmem>>, vector<8x128xf32>,
    return
  }
}

</mosaic_0001>

<llo_original>
// kernel: _forward_impl.1
$region0: #{_forward_impl.1}
  #allocation0 [shape = 'u32[]', space=smem, size = 0x4, offset = 0x4, fixed_abs, tag = 'smem constant byte address 0x4 - core index']
  #allocation1 [shape = 'u32[144,128]{1,0:T(1,128)}', space=vmem, size = 0x12000, scoped, tag = 'internal scratch']
  #allocation2 [shape = 'f32[1,1]{1,0:T(1,128)S(6)}', space=smem, size = 0x200, scoped, tag = 'scoped memory for _forward_impl.1']
  #allocation3 [shape = 'f32[1,1]{1,0:T(1,128)S(6)}', space=smem, size = 0x200, scoped, tag = 'scoped memory for _forward_impl.1']
  #allocation4 [shape = 'f32[1,1]{1,0:T(1,128)S(6)}', space=smem, size = 0x200, scoped, tag = 'scoped memory for _forward_impl.1']
  #allocation5 [shape = 'f32[1,1]{1,0:T(1,128)S(6)}', space=smem, size = 0x200, scoped, tag = 'scoped memory for _forward_impl.1']
  %s0 = inlined_call_operand.<no memory space> [shape: f32[1,1], index: 0, kind: input, shape index: {}]
  %s1 = inlined_call_operand.<no memory space> [shape: f32[1,1], index: 1, kind: input, shape index: {}]
  %s2 = inlined_call_operand.<no memory space> [shape: f32[1,1], index: 2, kind: input, shape index: {}]
  %s3 = inlined_call_operand.<no memory space> [shape: f32[1,1], index: 3, kind: input, shape index: {}]
  %s4 = inlined_call_operand.vmem [shape: f32[8,128], index: 4, kind: output, shape index: {}]
  %s5 = sld [smem:[#allocation0]]
  $region26: #{_forward_impl.1} parent=0
    _
  %s7 = ssub.s32 1, %s5
  %s8 = scalar_select 0, %s7, %s5
  %9 = sst [smem:[#allocation2]] %s0
  %10 = sst [smem:[#allocation3]] %s1
  %11 = sst [smem:[#allocation4]] %s2
  %12 = sst [smem:[#allocation5]] %s3
  // Predicated region
  $region2: #{_forward_impl.1} parent=0 // pred_check
    _
  $region3: #{_forward_impl.1} parent=0 // pred_check_branch
    %14 = sbr.rel (0) target = $region5
  $region4: #{_forward_impl.1} parent=0 // pred_region
    _
  $region5: #{_forward_impl.1} parent=0 // pred_fallthru
    _
  // Predicated region
  $region6: #{_forward_impl.1} parent=0 // pred_check
    _
  $region7: #{_forward_impl.1} parent=0 // pred_check_branch
    %16 = sbr.rel (0) target = $region9
  $region8: #{_forward_impl.1} parent=0 // pred_region
    _
  $region9: #{_forward_impl.1} parent=0 // pred_fallthru
    _
  // Predicated region
  $region10: #{_forward_impl.1} parent=0 // pred_check
    _
  $region11: #{_forward_impl.1} parent=0 // pred_check_branch
    %18 = sbr.rel (0) target = $region13
  $region12: #{_forward_impl.1} parent=0 // pred_region
    _
  $region13: #{_forward_impl.1} parent=0 // pred_fallthru
    _
  // Predicated region
  $region14: #{_forward_impl.1} parent=0 // pred_check
    _
  $region15: #{_forward_impl.1} parent=0 // pred_check_branch
    %20 = sbr.rel (0) target = $region17
  $region16: #{_forward_impl.1} parent=0 // pred_region
    _
  $region17: #{_forward_impl.1} parent=0 // pred_fallthru
    _
  %s21 = sld [smem:[#allocation2]]
  %s22 = sld [smem:[#allocation3]]
  %s23 = sld [smem:[#allocation4]]
  %s24 = sld [smem:[#allocation5]]
  %v25 = vlaneseq
  %v26 = vand.u32 %v25, 127
  %v27 = vand.u32 %v26, 1
  %vm28 = vcmp.eq.s32.totalorder %v27, 0
  %v29 = vstv %s21
  %v30 = vstv %s22
  %v31 = vsel %vm28, %v29, %v30
  %v32 = vstv %s23
  %v33 = vstv %s24
  %v34 = vsel %vm28, %v32, %v33
  %v35 = vsub.f32 0.0, %v31
  %v36 = vmul.f32 %v35, 1.442695
  %v37 = vpow.pop %v36
  %v38 = vmul.f32 %v37, %v34
  %v39 = vadd.f32 %v38, %v31
  %vm40 = vcmp.lt.s32.totalorder %v26, 2
  %v41 = vsel %vm40, %v39, 0.0
  %42 = vadd.xlane.f32.xlu0 %v41
  %v43 = vpop.xlane.xlu0 %42
  %vm44 = vcmp.eq.s32.totalorder %v26, 2
  %v45 = vsel %vm44, %v43, %v39
  %46 = vst [vmem:[%s4] sm:$0xff] %v45
  // Predicated region
  $region18: #{_forward_impl.1} parent=0 // pred_check
    _
  $region19: #{_forward_impl.1} parent=0 // pred_check_branch
    %48 = sbr.rel (0) target = $region21
  $region20: #{_forward_impl.1} parent=0 // pred_region
    _
  $region21: #{_forward_impl.1} parent=0 // pred_fallthru
    _
  // Predicated region
  $region22: #{_forward_impl.1} parent=0 // pred_check
    _
  $region23: #{_forward_impl.1} parent=0 // pred_check_branch
    %50 = sbr.rel (0) target = $region25
  $region24: #{_forward_impl.1} parent=0 // pred_region
    _
  $region25: #{_forward_impl.1} parent=0 // pred_fallthru
    _

</llo_original>
